<compile_context>
chip_gen: v7x
topology: tpu7x:2x2x1
jax: 0.10.0
libtpu: 0.0.40
codegen_flags: <defaults>
</compile_context>

<pallas_src>
import jax
import jax.numpy as jnp
from jax.experimental import pallas as pl
from jax.experimental.pallas import tpu as pltpu

LANE = 128


def _round_up(n, m):
    return ((n + m - 1) // m) * m


def mlp_kernel(x_ref, w1_ref, b1_ref, w2_ref, b2_ref,
               w3_ref, b3_ref, w4_ref, b4_ref, o_ref):
    f32 = jnp.float32
    cdt = w1_ref.dtype  # matmul / activation dtype (bf16 default, f32 for exact mode)

    # Layer 1: contract x's feature (last) dim against w1's fan-in dim on the MXU:
    #   (256, F) x (tb, F)^T -> (256, tb), f32 accumulation.  The in-kernel cast avoids a
    #   wrapper-side HBM pass over x; the batch dim lands on lanes (feature-major layout).
    x = x_ref[...].astype(cdt)
    h = jax.lax.dot_general(w1_ref[...], x, (((1,), (1,)), ((), ())),
                            preferred_element_type=f32)
    h = jnp.maximum(h.astype(cdt) + b1_ref[...], 0)   # bias+ReLU in act dtype; Dropout -> identity
    # Layer 2: (128, 256) @ (256, tb) -> (128, tb)
    h = jnp.dot(w2_ref[...], h, preferred_element_type=f32)
    h = jnp.maximum(h.astype(cdt) + b2_ref[...], 0)
    # Layer 3: (64, 128) @ (128, tb) -> (64, tb)
    h = jnp.dot(w3_ref[...], h, preferred_element_type=f32)
    h = jnp.maximum(h.astype(cdt) + b3_ref[...], 0)
    # Layer 4 (64 -> 1): VPU multiply + cross-sublane sum in f32 (lane-dense (1, tb) result,
    # keeps the MXU free), then sigmoid on the EUP.
    logits = jnp.sum(h * w4_ref[...], axis=0, keepdims=True) + b4_ref[...]
    o_ref[...] = jax.nn.sigmoid(logits)


def prepare_params(params, matmul_dtype=jnp.bfloat16):
    """One-time conversion of PyTorch-layout params to kernel dtypes/layout.

    Weights stay (out_features, in_features); biases are (out_features, 1) in the activation
    dtype; w4 becomes a (64, 1) f32 column for the VPU reduction head.  Call once, reuse.
    """
    return {
        "w1": params["w1"].astype(matmul_dtype), "b1": params["b1"].astype(matmul_dtype),
        "w2": params["w2"].astype(matmul_dtype), "b2": params["b2"].astype(matmul_dtype),
        "w3": params["w3"].astype(matmul_dtype), "b3": params["b3"].astype(matmul_dtype),
        "w4": params["w4"].reshape(-1, 1).astype(jnp.float32),
        "b4": params["b4"].astype(jnp.float32),
    }


def trading_model_forward(x, prepped, *, tb=2048):
    """x: (B, input_size) float32, batch-major.  prepped: output of prepare_params().
    Returns (B, 1) float32 probabilities."""
    B, F = x.shape
    assert tb % LANE == 0, "batch tile must be lane-aligned (multiple of 128)"

    # Clamp the tile to the (lane-aligned) batch; for decent-sized batches keep >= 2 grid steps
    # so the "parallel" axis can shard across both TensorCores on v7x (one extra ~0.35us step on
    # single-TC chips is negligible at that size).
    tb = min(tb, _round_up(B, LANE))
    if pl.cdiv(B, tb) < 2 and B > 2 * LANE:
        tb = _round_up(pl.cdiv(B, 2), LANE)
    grid = pl.cdiv(B, tb)
    # Output allocated at exactly grid*tb lanes -> every output tile is full-width (unmasked
    # stores); the tail is sliced off below.  The final x block may read past B: those garbage
    # columns never mix with valid ones (every op is per-batch-column) and are discarded.
    B_out = grid * tb

    w1, b1 = prepped["w1"], prepped["b1"]
    w2, b2 = prepped["w2"], prepped["b2"]
    w3, b3 = prepped["w3"], prepped["b3"]
    w4, b4 = prepped["w4"], prepped["b4"]

    full = lambda a: pl.BlockSpec(a.shape, lambda i: (0,) * a.ndim)

    weight_bytes = sum(int(a.size) * a.dtype.itemsize for a in (w1, b1, w2, b2, w3, b3, w4, b4))
    flops = 2 * B_out * (F * 256 + 256 * 128 + 128 * 64 + 64)
    bytes_accessed = int(x.size) * x.dtype.itemsize + weight_bytes + B_out * 4

    # VMEM budget from the actual tile footprint (double-buffered x/out tiles, f32 dot results +
    # act-dtype copies, resident weights), capped safely below v7x's 64 MiB physical VMEM.
    act_bytes = w1.dtype.itemsize
    est = (2 * tb * _round_up(F, LANE) * x.dtype.itemsize      # x tile (lane-padded), 2 buffers
           + tb * (256 + 128 + 64) * (4 + act_bytes)           # f32 accumulators + act copies
           + 2 * 8 * tb * 4                                    # output tile (sublane-padded)
           + 2 * weight_bytes)
    vmem_limit = int(min(56 << 20, max(32 << 20, 2 * est)))

    out = pl.pallas_call(
        mlp_kernel,
        out_shape=jax.ShapeDtypeStruct((1, B_out), jnp.float32),
        grid_spec=pltpu.PrefetchScalarGridSpec(
            num_scalar_prefetch=0,
            grid=(grid,),
            in_specs=[
                # Batch-major x tile: full feature rows -> fully contiguous DMA (no strided read,
                # so default double-buffering suffices; no pl.Buffered(3) needed).
                pl.BlockSpec((tb, F), lambda i: (i, 0)),
                full(w1), full(b1),
                full(w2), full(b2),
                full(w3), full(b3),
                full(w4), full(b4),
            ],
            out_specs=pl.BlockSpec((1, tb), lambda i: (0, i)),   # lane-dense output slab
        ),
        compiler_params=pltpu.CompilerParams(
            dimension_semantics=("parallel",),
            vmem_limit_bytes=vmem_limit),
        cost_estimate=pl.CostEstimate(
            flops=flops, transcendentals=B_out, bytes_accessed=bytes_accessed),
    )(x, w1, b1, w2, b2, w3, b3, w4, b4)

    return out[0, :B].reshape(B, 1)


def init_params(key, input_size):
    """PyTorch nn.Linear layout: weight (fan_out, fan_in), bias (fan_out, 1); uniform +-1/sqrt(fan_in)."""
    dims = [(input_size, 256), (256, 128), (128, 64), (64, 1)]
    params = {}
    for idx, (fin, fout) in enumerate(dims, start=1):
        key, kw, kb = jax.random.split(key, 3)
        bound = 1.0 / jnp.sqrt(float(fin))
        params[f"w{idx}"] = jax.random.uniform(
            kw, (fout, fin), jnp.float32, minval=-bound, maxval=bound)
        params[f"b{idx}"] = jax.random.uniform(
            kb, (fout, 1), jnp.float32, minval=-bound, maxval=bound)
    return params


def reference_forward(x, p):
    h = jnp.maximum(x @ p["w1"].T + p["b1"].T, 0.0)
    h = jnp.maximum(h @ p["w2"].T + p["b2"].T, 0.0)
    h = jnp.maximum(h @ p["w3"].T + p["b3"].T, 0.0)
    return jax.nn.sigmoid(h @ p["w4"].T + p["b4"].T)


if __name__ == "__main__":
    key = jax.random.PRNGKey(0)
    input_size = 32

    kx, kp, kx2 = jax.random.split(key, 3)
    params = init_params(kp, input_size)

    # Case 1: small batch (single lane-aligned tile).  Exact f32 mode checks numerics tightly;
    # the shipped bf16 default checks within mixed-precision tolerance.
    batch = 16
    x = jax.random.normal(kx, (batch, input_size), jnp.float32)
    ref = reference_forward(x, params)

    pp_f32 = prepare_params(params, matmul_dtype=jnp.float32)     # test-only exact mode
    out_f32 = jax.block_until_ready(trading_model_forward(x, pp_f32))
    assert out_f32.shape == (batch, 1)
    assert jnp.allclose(out_f32, ref, atol=1e-5, rtol=1e-5)

    pp_bf16 = prepare_params(params)                               # shipped bf16 default
    out_bf16 = jax.block_until_ready(trading_model_forward(x, pp_bf16))
    assert out_bf16.shape == (batch, 1)
    assert jnp.allclose(out_bf16, ref, atol=3e-2)

    # Case 2: ragged batch, multi-tile grid (partial final input block, no pad copy).
    batch2 = 200
    x2 = jax.random.normal(kx2, (batch2, input_size), jnp.float32)
    ref2 = reference_forward(x2, params)
    out2 = jax.block_until_ready(trading_model_forward(x2, pp_bf16, tb=128))
    assert out2.shape == (batch2, 1)
    assert jnp.allclose(out2, ref2, atol=3e-2)

    print("KERNEL_OK")
</pallas_src>

<mosaic_0001>
module attributes {stable_mosaic.version = 11 : i64} {
  func.func @mlp_kernel(%arg0: i32, %arg1: memref<128x32xf32, #tpu.memory_space<vmem>>, %arg2: memref<256x32xf32, #tpu.memory_space<vmem>>, %arg3: memref<256x1xf32, #tpu.memory_space<vmem>>, %arg4: memref<128x256xf32, #tpu.memory_space<vmem>>, %arg5: memref<128x1xf32, #tpu.memory_space<vmem>>, %arg6: memref<64x128xf32, #tpu.memory_space<vmem>>, %arg7: memref<64x1xf32, #tpu.memory_space<vmem>>, %arg8: memref<64x1xf32, #tpu.memory_space<vmem>>, %arg9: memref<1x1xf32, #tpu.memory_space<vmem>>, %arg10: memref<1x128xf32, #tpu.memory_space<vmem>>) attributes {dimension_semantics = [#tpu.dimension_semantics<parallel>], iteration_bounds = array<i64: 1>, scalar_prefetch = 0 : i64, scratch_operands = 0 : i64, tpu.core_type = #tpu.core_type<tc>, window_params = [{transform_indices = @transform_0, window_bounds = array<i64: 128, 32>}, {pipeline_mode = #tpu.pipeline_mode<synchronous>, transform_indices = @transform_1, window_bounds = array<i64: 256, 32>}, {pipeline_mode = #tpu.pipeline_mode<synchronous>, transform_indices = @transform_2, window_bounds = array<i64: 256, 1>}, {pipeline_mode = #tpu.pipeline_mode<synchronous>, transform_indices = @transform_3, window_bounds = array<i64: 128, 256>}, {pipeline_mode = #tpu.pipeline_mode<synchronous>, transform_indices = @transform_4, window_bounds = array<i64: 128, 1>}, {pipeline_mode = #tpu.pipeline_mode<synchronous>, transform_indices = @transform_5, window_bounds = array<i64: 64, 128>}, {pipeline_mode = #tpu.pipeline_mode<synchronous>, transform_indices = @transform_6, window_bounds = array<i64: 64, 1>}, {pipeline_mode = #tpu.pipeline_mode<synchronous>, transform_indices = @transform_7, window_bounds = array<i64: 64, 1>}, {pipeline_mode = #tpu.pipeline_mode<synchronous>, transform_indices = @transform_8, window_bounds = array<i64: 1, 1>}, {transform_indices = @transform_9, window_bounds = array<i64: 1, 128>}]} {
    %c0 = arith.constant 0 : index
    %c0_0 = arith.constant 0 : index
    %0 = vector.load %arg1[%c0, %c0_0] : memref<128x32xf32, #tpu.memory_space<vmem>>, vector<128x32xf32>
    %c0_1 = arith.constant 0 : index
    %c0_2 = arith.constant 0 : index
    %1 = vector.load %arg2[%c0_1, %c0_2] : memref<256x32xf32, #tpu.memory_space<vmem>>, vector<256x32xf32>
    %cst = arith.constant dense<0.000000e+00> : vector<256x128xf32>
    %2 = tpu.matmul %1, %0, %cst {dimension_numbers = #tpu.dot_dimension_numbers<[1], [1], [0], [0], [0, 0, 1, 0], [], []>} : vector<256x32xf32>, vector<128x32xf32>, vector<256x128xf32> -> vector<256x128xf32>
    %c0_3 = arith.constant 0 : index
    %c0_4 = arith.constant 0 : index
    %3 = vector.load %arg3[%c0_3, %c0_4] : memref<256x1xf32, #tpu.memory_space<vmem>>, vector<256x1xf32>
    %4 = vector.broadcast %3 : vector<256x1xf32> to vector<256x128xf32>
    %5 = arith.addf %2, %4 : vector<256x128xf32>
    %cst_5 = arith.constant 0.000000e+00 : f32
    %6 = vector.broadcast %cst_5 : f32 to vector<256x128xf32>
    %7 = arith.maximumf %5, %6 : vector<256x128xf32>
    %c0_6 = arith.constant 0 : index
    %c0_7 = arith.constant 0 : index
    %8 = vector.load %arg4[%c0_6, %c0_7] : memref<128x256xf32, #tpu.memory_space<vmem>>, vector<128x256xf32>
    %cst_8 = arith.constant dense<0.000000e+00> : vector<128x128xf32>
    %9 = tpu.matmul %8, %7, %cst_8 {dimension_numbers = #tpu.dot_dimension_numbers<[1], [0], [0], [1], [0, 0, 1, 1], [], []>} : vector<128x256xf32>, vector<256x128xf32>, vector<128x128xf32> -> vector<128x128xf32>
    %c0_9 = arith.constant 0 : index
    %c0_10 = arith.constant 0 : index
    %10 = vector.load %arg5[%c0_9, %c0_10] : memref<128x1xf32, #tpu.memory_space<vmem>>, vector<128x1xf32>
    %11 = vector.broadcast %10 : vector<128x1xf32> to vector<128x128xf32>
    %12 = arith.addf %9, %11 : vector<128x128xf32>
    %cst_11 = arith.constant 0.000000e+00 : f32
    %13 = vector.broadcast %cst_11 : f32 to vector<128x128xf32>
    %14 = arith.maximumf %12, %13 : vector<128x128xf32>
    %c0_12 = arith.constant 0 : index
    %c0_13 = arith.constant 0 : index
    %15 = vector.load %arg6[%c0_12, %c0_13] : memref<64x128xf32, #tpu.memory_space<vmem>>, vector<64x128xf32>
    %cst_14 = arith.constant dense<0.000000e+00> : vector<64x128xf32>
    %16 = tpu.matmul %15, %14, %cst_14 {dimension_numbers = #tpu.dot_dimension_numbers<[1], [0], [0], [1], [0, 0, 1, 1], [], []>} : vector<64x128xf32>, vector<128x128xf32>, vector<64x128xf32> -> vector<64x128xf32>
    %c0_15 = arith.constant 0 : index
    %c0_16 = arith.constant 0 : index
    %17 = vector.load %arg7[%c0_15, %c0_16] : memref<64x1xf32, #tpu.memory_space<vmem>>, vector<64x1xf32>
    %18 = vector.broadcast %17 : vector<64x1xf32> to vector<64x128xf32>
    %19 = arith.addf %16, %18 : vector<64x128xf32>
    %cst_17 = arith.constant 0.000000e+00 : f32
    %20 = vector.broadcast %cst_17 : f32 to vector<64x128xf32>
    %21 = arith.maximumf %19, %20 : vector<64x128xf32>
    %c0_18 = arith.constant 0 : index
    %c0_19 = arith.constant 0 : index
    %22 = vector.load %arg8[%c0_18, %c0_19] : memref<64x1xf32, #tpu.memory_space<vmem>>, vector<64x1xf32>
    %23 = vector.broadcast %22 : vector<64x1xf32> to vector<64x128xf32>
    %24 = arith.mulf %21, %23 : vector<64x128xf32>
    %cst_20 = arith.constant dense<0.000000e+00> : vector<128xf32>
    %25 = vector.multi_reduction <add>, %24, %cst_20 [0] : vector<64x128xf32> to vector<128xf32>
    %26 = vector.shape_cast %25 : vector<128xf32> to vector<1x128xf32>
    %c0_21 = arith.constant 0 : index
    %c0_22 = arith.constant 0 : index
    %27 = vector.load %arg9[%c0_21, %c0_22] : memref<1x1xf32, #tpu.memory_space<vmem>>, vector<1x1xf32>
    %28 = vector.broadcast %27 : vector<1x1xf32> to vector<1x128xf32>
    %29 = arith.addf %26, %28 : vector<1x128xf32>
    %30 = arith.negf %29 : vector<1x128xf32>
    %31 = math.exp %30 : vector<1x128xf32>
    %cst_23 = arith.constant 1.000000e+00 : f32
    %32 = vector.broadcast %cst_23 : f32 to vector<1x128xf32>
    %33 = arith.addf %32, %31 : vector<1x128xf32>
    %34 = arith.divf %32, %33 : vector<1x128xf32>
    %c0_24 = arith.constant 0 : index
    %c0_25 = arith.constant 0 : index
    %35 = vector.load %arg10[%c0_24, %c0_25] : memref<1x128xf32, #tpu.memory_space<vmem>>, vector<1x128xf32>
    tpu.vector_store %arg10[%c0_24, %c0_25], %34 {strides = array<i32>} : memref<1x128xf32, #tpu.memory_space<vmem>>, vector<1x128xf32>,
    return
  }
  func.func @transform_0(%arg0: i32) -> (i32, i32) {
    %c0_i32 = arith.constant 0 : i32
    %c0_i32_0 = arith.constant 0 : i32
    return %arg0, %c0_i32 : i32, i32
  }
  func.func @transform_1(%arg0: i32) -> (i32, i32) {
    %c0_i32 = arith.constant 0 : i32
    %c0_i32_0 = arith.constant 0 : i32
    %c0_i32_1 = arith.constant 0 : i32
    return %c0_i32, %c0_i32_0 : i32, i32
  }
  func.func @transform_2(%arg0: i32) -> (i32, i32) {
    %c0_i32 = arith.constant 0 : i32
    %c0_i32_0 = arith.constant 0 : i32
    %c0_i32_1 = arith.constant 0 : i32
    return %c0_i32, %c0_i32_0 : i32, i32
  }
  func.func @transform_3(%arg0: i32) -> (i32, i32) {
    %c0_i32 = arith.constant 0 : i32
    %c0_i32_0 = arith.constant 0 : i32
    %c0_i32_1 = arith.constant 0 : i32
    return %c0_i32, %c0_i32_0 : i32, i32
  }
  func.func @transform_4(%arg0: i32) -> (i32, i32) {
    %c0_i32 = arith.constant 0 : i32
    %c0_i32_0 = arith.constant 0 : i32
    %c0_i32_1 = arith.constant 0 : i32
    return %c0_i32, %c0_i32_0 : i32, i32
  }
  func.func @transform_5(%arg0: i32) -> (i32, i32) {
    %c0_i32 = arith.constant 0 : i32
    %c0_i32_0 = arith.constant 0 : i32
    %c0_i32_1 = arith.constant 0 : i32
    return %c0_i32, %c0_i32_0 : i32, i32
  }
  func.func @transform_6(%arg0: i32) -> (i32, i32) {
    %c0_i32 = arith.constant 0 : i32
    %c0_i32_0 = arith.constant 0 : i32
    %c0_i32_1 = arith.constant 0 : i32
    return %c0_i32, %c0_i32_0 : i32, i32
  }
  func.func @transform_7(%arg0: i32) -> (i32, i32) {
    %c0_i32 = arith.constant 0 : i32
    %c0_i32_0 = arith.constant 0 : i32
    %c0_i32_1 = arith.constant 0 : i32
    return %c0_i32, %c0_i32_0 : i32, i32
  }
  func.func @transform_8(%arg0: i32) -> (i32, i32) {
    %c0_i32 = arith.constant 0 : i32
    %c0_i32_0 = arith.constant 0 : i32
    %c0_i32_1 = arith.constant 0 : i32
    return %c0_i32, %c0_i32_0 : i32, i32
  }
  func.func @transform_9(%arg0: i32) -> (i32, i32) {
    %c0_i32 = arith.constant 0 : i32
    %c0_i32_0 = arith.constant 0 : i32
    return %c0_i32, %arg0 : i32, i32
  }
}

</mosaic_0001>

<llo_original>
// kernel: tpu_custom_call.1
$region0: #{tpu_custom_call.1}
  #allocation0 [shape = 'u32[]', space=smem, size = 0x4, offset = 0x4, fixed_abs, tag = 'smem constant byte address 0x4 - core index']
  #allocation1 [shape = 'u32[144,128]{1,0:T(1,128)}', space=vmem, size = 0x12000, scoped, tag = 'internal scratch']
  #allocation2 [shape = 'f32[1,1]{1,0:T(1,128)S(1)}', space=vmem, size = 0x200, scoped, tag = 'scoped memory for tpu_custom_call.1']
  %s0 = inlined_call_operand.vmem [shape: f32[16,32], index: 0, kind: input, shape index: {}]
  %s1 = inlined_call_operand.vmem [shape: f32[256,32], index: 1, kind: input, shape index: {}]
  %s2 = inlined_call_operand.vmem [shape: f32[256,1], index: 2, kind: input, shape index: {}]
  %s3 = inlined_call_operand.vmem [shape: f32[128,256], index: 3, kind: input, shape index: {}]
  %s4 = inlined_call_operand.vmem [shape: f32[128,1], index: 4, kind: input, shape index: {}]
  %s5 = inlined_call_operand.vmem [shape: f32[64,128], index: 5, kind: input, shape index: {}]
  %s6 = inlined_call_operand.vmem [shape: f32[64,1], index: 6, kind: input, shape index: {}]
  %s7 = inlined_call_operand.vmem [shape: f32[64,1], index: 7, kind: input, shape index: {}]
  %s8 = inlined_call_operand.<no memory space> [shape: f32[1,1], index: 8, kind: input, shape index: {}]
  %s9 = inlined_call_operand.hbm [shape: f32[1,128], index: 9, kind: output, shape index: {}]
  %s10 = sld [smem:[#allocation0]]
  $region46: #{tpu_custom_call.1} parent=0
    _
  %s12 = ssub.s32 1, %s10
  %s13 = scalar_select 0, %s12, %s10
  %v14 = vstv %s8
  %15 = vst [vmem:[#allocation2] sm:$0x1] %v14
  $region1: #{tpu_custom_call.1} parent=0
    #allocation3 [shape = 'u8[512]{0}', space=vmem, size = 0x400, scoped, tag = 'output window, operand 0, single buffered']
    #allocation4 [shape = 's32[1]{0}', space=sflag, size = 0x4, scoped, tag = 'scoped memory for tpu_custom_call.1']
    %16 = vsyncpa [#allocation4], 0
    // Predicated region
    $region2: #{tpu_custom_call.1} parent=1 // pred_check
      _
    $region3: #{tpu_custom_call.1} parent=1 // pred_check_branch
      %18 = sbr.rel (0) target = $region5
    $region4: #{tpu_custom_call.1} parent=1 // pred_region
      _
    $region5: #{tpu_custom_call.1} parent=1 // pred_fallthru
      _
    // Predicated region
    $region6: #{tpu_custom_call.1} parent=1 // pred_check
      _
    $region7: #{tpu_custom_call.1} parent=1 // pred_check_branch
      %20 = sbr.rel (0) target = $region9
    $region8: #{tpu_custom_call.1} parent=1 // pred_region
      _
    $region9: #{tpu_custom_call.1} parent=1 // pred_fallthru
      _
    // Predicated region
    $region10: #{tpu_custom_call.1} parent=1 // pred_check
      _
    $region11: #{tpu_custom_call.1} parent=1 // pred_check_branch
      %22 = sbr.rel (0) target = $region13
    $region12: #{tpu_custom_call.1} parent=1 // pred_region
      _
    $region13: #{tpu_custom_call.1} parent=1 // pred_fallthru
      _
    // Predicated region
    $region14: #{tpu_custom_call.1} parent=1 // pred_check
      _
    $region15: #{tpu_custom_call.1} parent=1 // pred_check_branch
      %24 = sbr.rel (0) target = $region17
    $region16: #{tpu_custom_call.1} parent=1 // pred_region
      _
    $region17: #{tpu_custom_call.1} parent=1 // pred_fallthru
      _
    // Predicated region
    $region18: #{tpu_custom_call.1} parent=1 // pred_check
      _
    $region19: #{tpu_custom_call.1} parent=1 // pred_check_branch
      %26 = sbr.rel (0) target = $region21
    $region20: #{tpu_custom_call.1} parent=1 // pred_region
      _
    $region21: #{tpu_custom_call.1} parent=1 // pred_fallthru
      _
    // Predicated region
    $region22: #{tpu_custom_call.1} parent=1 // pred_check
      _
    $region23: #{tpu_custom_call.1} parent=1 // pred_check_branch
      %28 = sbr.rel (0) target = $region25
    $region24: #{tpu_custom_call.1} parent=1 // pred_region
      _
    $region25: #{tpu_custom_call.1} parent=1 // pred_fallthru
      _
    // Predicated region
    $region26: #{tpu_custom_call.1} parent=1 // pred_check
      _
    $region27: #{tpu_custom_call.1} parent=1 // pred_check_branch
      %30 = sbr.rel (0) target = $region29
    $region28: #{tpu_custom_call.1} parent=1 // pred_region
      _
    $region29: #{tpu_custom_call.1} parent=1 // pred_fallthru
      _
    // Predicated region
    $region30: #{tpu_custom_call.1} parent=1 // pred_check
      _
    $region31: #{tpu_custom_call.1} parent=1 // pred_check_branch
      %32 = sbr.rel (0) target = $region33
    $region32: #{tpu_custom_call.1} parent=1 // pred_region
      _
    $region33: #{tpu_custom_call.1} parent=1 // pred_fallthru
      _
    // Predicated region
    $region34: #{tpu_custom_call.1} parent=1 // pred_check
      _
    $region35: #{tpu_custom_call.1} parent=1 // pred_check_branch
      %34 = sbr.rel (0) target = $region37
    $region36: #{tpu_custom_call.1} parent=1 // pred_region
      _
    $region37: #{tpu_custom_call.1} parent=1 // pred_fallthru
      _
    %v35 = vld [vmem:[%s0] sm:$0xff]
    %v36 = vld [vmem:[%s0 + $0x8] sm:$0xff]
    %v37 = vld [vmem:[%s0 + $0x10] sm:$0xff]
    %v38 = vld [vmem:[%s0 + $0x18] sm:$0xff]
    %v39 = vld [vmem:[%s0 + $0x20] sm:$0xff]
    %v40 = vld [vmem:[%s0 + $0x28] sm:$0xff]
    %v41 = vld [vmem:[%s0 + $0x30] sm:$0xff]
    %v42 = vld [vmem:[%s0 + $0x38] sm:$0xff]
    %v43 = vld [vmem:[%s0 + $0x40] sm:$0xff]
    %v44 = vld [vmem:[%s0 + $0x48] sm:$0xff]
    %v45 = vld [vmem:[%s0 + $0x50] sm:$0xff]
    %v46 = vld [vmem:[%s0 + $0x58] sm:$0xff]
    %v47 = vld [vmem:[%s0 + $0x60] sm:$0xff]
    %v48 = vld [vmem:[%s0 + $0x68] sm:$0xff]
    %v49 = vld [vmem:[%s0 + $0x70] sm:$0xff]
    %v50 = vld [vmem:[%s0 + $0x78] sm:$0xff]
    %v51 = vld [vmem:[%s1] sm:$0xff]
    %v52 = vld [vmem:[%s1 + $0x8] sm:$0xff]
    %v53 = vld [vmem:[%s1 + $0x10] sm:$0xff]
    %v54 = vld [vmem:[%s1 + $0x18] sm:$0xff]
    %v55 = vld [vmem:[%s1 + $0x20] sm:$0xff]
    %v56 = vld [vmem:[%s1 + $0x28] sm:$0xff]
    %v57 = vld [vmem:[%s1 + $0x30] sm:$0xff]
    %v58 = vld [vmem:[%s1 + $0x38] sm:$0xff]
    %v59 = vld [vmem:[%s1 + $0x40] sm:$0xff]
    %v60 = vld [vmem:[%s1 + $0x48] sm:$0xff]
    %v61 = vld [vmem:[%s1 + $0x50] sm:$0xff]
    %v62 = vld [vmem:[%s1 + $0x58] sm:$0xff]
    %v63 = vld [vmem:[%s1 + $0x60] sm:$0xff]
    %v64 = vld [vmem:[%s1 + $0x68] sm:$0xff]
    %v65 = vld [vmem:[%s1 + $0x70] sm:$0xff]
    %v66 = vld [vmem:[%s1 + $0x78] sm:$0xff]
    %v67 = vld [vmem:[%s1 + $0x80] sm:$0xff]
    %v68 = vld [vmem:[%s1 + $0x88] sm:$0xff]
    %v69 = vld [vmem:[%s1 + $0x90] sm:$0xff]
    %v70 = vld [vmem:[%s1 + $0x98] sm:$0xff]
    %v71 = vld [vmem:[%s1 + $0xa0] sm:$0xff]
    %v72 = vld [vmem:[%s1 + $0xa8] sm:$0xff]
    %v73 = vld [vmem:[%s1 + $0xb0] sm:$0xff]
    %v74 = vld [vmem:[%s1 + $0xb8] sm:$0xff]
    %v75 = vld [vmem:[%s1 + $0xc0] sm:$0xff]
    %v76 = vld [vmem:[%s1 + $0xc8] sm:$0xff]
    %v77 = vld [vmem:[%s1 + $0xd0] sm:$0xff]
    %v78 = vld [vmem:[%s1 + $0xd8] sm:$0xff]
    %v79 = vld [vmem:[%s1 + $0xe0] sm:$0xff]
    %v80 = vld [vmem:[%s1 + $0xe8] sm:$0xff]
    %v81 = vld [vmem:[%s1 + $0xf0] sm:$0xff]
    %v82 = vld [vmem:[%s1 + $0xf8] sm:$0xff]
    %v83 = vld [vmem:[%s2] sm:$0xff]
    %v84 = vld [vmem:[%s2 + $0x8] sm:$0xff]
    %v85 = vld [vmem:[%s2 + $0x10] sm:$0xff]
    %v86 = vld [vmem:[%s2 + $0x18] sm:$0xff]
    %v87 = vld [vmem:[%s2 + $0x20] sm:$0xff]
    %v88 = vld [vmem:[%s2 + $0x28] sm:$0xff]
    %v89 = vld [vmem:[%s2 + $0x30] sm:$0xff]
    %v90 = vld [vmem:[%s2 + $0x38] sm:$0xff]
    %v91 = vld [vmem:[%s2 + $0x40] sm:$0xff]
    %v92 = vld [vmem:[%s2 + $0x48] sm:$0xff]
    %v93 = vld [vmem:[%s2 + $0x50] sm:$0xff]
    %v94 = vld [vmem:[%s2 + $0x58] sm:$0xff]
    %v95 = vld [vmem:[%s2 + $0x60] sm:$0xff]
    %v96 = vld [vmem:[%s2 + $0x68] sm:$0xff]
    %v97 = vld [vmem:[%s2 + $0x70] sm:$0xff]
    %v98 = vld [vmem:[%s2 + $0x78] sm:$0xff]
    %v99 = vld [vmem:[%s2 + $0x80] sm:$0xff]
    %v100 = vld [vmem:[%s2 + $0x88] sm:$0xff]
    %v101 = vld [vmem:[%s2 + $0x90] sm:$0xff]
    %v102 = vld [vmem:[%s2 + $0x98] sm:$0xff]
    %v103 = vld [vmem:[%s2 + $0xa0] sm:$0xff]
    %v104 = vld [vmem:[%s2 + $0xa8] sm:$0xff]
    %v105 = vld [vmem:[%s2 + $0xb0] sm:$0xff]
    %v106 = vld [vmem:[%s2 + $0xb8] sm:$0xff]
    %v107 = vld [vmem:[%s2 + $0xc0] sm:$0xff]
    %v108 = vld [vmem:[%s2 + $0xc8] sm:$0xff]
    %v109 = vld [vmem:[%s2 + $0xd0] sm:$0xff]
    %v110 = vld [vmem:[%s2 + $0xd8] sm:$0xff]
    %v111 = vld [vmem:[%s2 + $0xe0] sm:$0xff]
    %v112 = vld [vmem:[%s2 + $0xe8] sm:$0xff]
    %v113 = vld [vmem:[%s2 + $0xf0] sm:$0xff]
    %v114 = vld [vmem:[%s2 + $0xf8] sm:$0xff]
    %116 = vset.pattern.permute.xlu0 0
    %117 = vperm.xlu0 %116, %v83
    %v118 = vpop.permute.xlu0 %117
    %121 = vset.pattern.permute.xlu0 0
    %122 = vperm.xlu0 %121, %v84
    %v123 = vpop.permute.xlu0 %122
    %126 = vset.pattern.permute.xlu0 0
    %127 = vperm.xlu0 %126, %v85
    %v128 = vpop.permute.xlu0 %127
    %131 = vset.pattern.permute.xlu0 0
    %132 = vperm.xlu0 %131, %v86
    %v133 = vpop.permute.xlu0 %132
    %136 = vset.pattern.permute.xlu0 0
    %137 = vperm.xlu0 %136, %v87
    %v138 = vpop.permute.xlu0 %137
    %141 = vset.pattern.permute.xlu0 0
    %142 = vperm.xlu0 %141, %v88
    %v143 = vpop.permute.xlu0 %142
    %146 = vset.pattern.permute.xlu0 0
    %147 = vperm.xlu0 %146, %v89
    %v148 = vpop.permute.xlu0 %147
    %151 = vset.pattern.permute.xlu0 0
    %152 = vperm.xlu0 %151, %v90
    %v153 = vpop.permute.xlu0 %152
    %156 = vset.pattern.permute.xlu0 0
    %157 = vperm.xlu0 %156, %v91
    %v158 = vpop.permute.xlu0 %157
    %161 = vset.pattern.permute.xlu0 0
    %162 = vperm.xlu0 %161, %v92
    %v163 = vpop.permute.xlu0 %162
    %166 = vset.pattern.permute.xlu0 0
    %167 = vperm.xlu0 %166, %v93
    %v168 = vpop.permute.xlu0 %167
    %171 = vset.pattern.permute.xlu0 0
    %172 = vperm.xlu0 %171, %v94
    %v173 = vpop.permute.xlu0 %172
    %176 = vset.pattern.permute.xlu0 0
    %177 = vperm.xlu0 %176, %v95
    %v178 = vpop.permute.xlu0 %177
    %181 = vset.pattern.permute.xlu0 0
    %182 = vperm.xlu0 %181, %v96
    %v183 = vpop.permute.xlu0 %182
    %186 = vset.pattern.permute.xlu0 0
    %187 = vperm.xlu0 %186, %v97
    %v188 = vpop.permute.xlu0 %187
    %191 = vset.pattern.permute.xlu0 0
    %192 = vperm.xlu0 %191, %v98
    %v193 = vpop.permute.xlu0 %192
    %196 = vset.pattern.permute.xlu0 0
    %197 = vperm.xlu0 %196, %v99
    %v198 = vpop.permute.xlu0 %197
    %201 = vset.pattern.permute.xlu0 0
    %202 = vperm.xlu0 %201, %v100
    %v203 = vpop.permute.xlu0 %202
    %206 = vset.pattern.permute.xlu0 0
    %207 = vperm.xlu0 %206, %v101
    %v208 = vpop.permute.xlu0 %207
    %211 = vset.pattern.permute.xlu0 0
    %212 = vperm.xlu0 %211, %v102
    %v213 = vpop.permute.xlu0 %212
    %216 = vset.pattern.permute.xlu0 0
    %217 = vperm.xlu0 %216, %v103
    %v218 = vpop.permute.xlu0 %217
    %221 = vset.pattern.permute.xlu0 0
    %222 = vperm.xlu0 %221, %v104
    %v223 = vpop.permute.xlu0 %222
    %226 = vset.pattern.permute.xlu0 0
    %227 = vperm.xlu0 %226, %v105
    %v228 = vpop.permute.xlu0 %227
    %231 = vset.pattern.permute.xlu0 0
    %232 = vperm.xlu0 %231, %v106
    %v233 = vpop.permute.xlu0 %232
    %236 = vset.pattern.permute.xlu0 0
    %237 = vperm.xlu0 %236, %v107
    %v238 = vpop.permute.xlu0 %237
    %241 = vset.pattern.permute.xlu0 0
    %242 = vperm.xlu0 %241, %v108
    %v243 = vpop.permute.xlu0 %242
    %246 = vset.pattern.permute.xlu0 0
    %247 = vperm.xlu0 %246, %v109
    %v248 = vpop.permute.xlu0 %247
    %251 = vset.pattern.permute.xlu0 0
    %252 = vperm.xlu0 %251, %v110
    %v253 = vpop.permute.xlu0 %252
    %256 = vset.pattern.permute.xlu0 0
    %257 = vperm.xlu0 %256, %v111
    %v258 = vpop.permute.xlu0 %257
    %261 = vset.pattern.permute.xlu0 0
    %262 = vperm.xlu0 %261, %v112
    %v263 = vpop.permute.xlu0 %262
    %266 = vset.pattern.permute.xlu0 0
    %267 = vperm.xlu0 %266, %v113
    %v268 = vpop.permute.xlu0 %267
    %271 = vset.pattern.permute.xlu0 0
    %272 = vperm.xlu0 %271, %v114
    %v273 = vpop.permute.xlu0 %272
    %vm275 = vcmask 261120
    %v277 = vsel %vm275, %v51, 0
    %v280 = vsel %vm275, %v52, 0
    %v283 = vsel %vm275, %v53, 0
    %v286 = vsel %vm275, %v54, 0
    %v289 = vsel %vm275, %v55, 0
    %v292 = vsel %vm275, %v56, 0
    %v295 = vsel %vm275, %v57, 0
    %v298 = vsel %vm275, %v58, 0
    %v301 = vsel %vm275, %v59, 0
    %v304 = vsel %vm275, %v60, 0
    %v307 = vsel %vm275, %v61, 0
    %v310 = vsel %vm275, %v62, 0
    %v313 = vsel %vm275, %v63, 0
    %v316 = vsel %vm275, %v64, 0
    %v319 = vsel %vm275, %v65, 0
    %v322 = vsel %vm275, %v66, 0
    %v325 = vsel %vm275, %v67, 0
    %v328 = vsel %vm275, %v68, 0
    %v331 = vsel %vm275, %v69, 0
    %v334 = vsel %vm275, %v70, 0
    %v337 = vsel %vm275, %v71, 0
    %v340 = vsel %vm275, %v72, 0
    %v343 = vsel %vm275, %v73, 0
    %v346 = vsel %vm275, %v74, 0
    %v349 = vsel %vm275, %v75, 0
    %v352 = vsel %vm275, %v76, 0
    %v355 = vsel %vm275, %v77, 0
    %v358 = vsel %vm275, %v78, 0
    %v361 = vsel %vm275, %v79, 0
    %v364 = vsel %vm275, %v80, 0
    %v367 = vsel %vm275, %v81, 0
    %v370 = vsel %vm275, %v82, 0
    %v373 = vsel %vm275, %v35, 0
    %v376 = vsel %vm275, %v36, 0
    %v379 = vsel %vm275, %v37, 0
    %v382 = vsel %vm275, %v38, 0
    %v385 = vsel %vm275, %v39, 0
    %v388 = vsel %vm275, %v40, 0
    %v391 = vsel %vm275, %v41, 0
    %v394 = vsel %vm275, %v42, 0
    %v397 = vsel %vm275, %v43, 0
    %v400 = vsel %vm275, %v44, 0
    %v403 = vsel %vm275, %v45, 0
    %v406 = vsel %vm275, %v46, 0
    %v409 = vsel %vm275, %v47, 0
    %v412 = vsel %vm275, %v48, 0
    %v415 = vsel %vm275, %v49, 0
    %v418 = vsel %vm275, %v50, 0
    %420 = vmatprep.subr.mxu0 0.0
    %421 = vmatpush1.xpose.msra.mxu0 %v373
    %422 = vmatprep.subr.mxu0 0.0
    %423 = vmatpush1.xpose.msra.mxu0 %v376
    %424 = vmatprep.subr.mxu0 0.0
    %425 = vmatpush1.xpose.msra.mxu0 %v379
    %426 = vmatprep.subr.mxu0 0.0
    %427 = vmatpush1.xpose.msra.mxu0 %v382
    %428 = vmatprep.subr.mxu0 0.0
    %429 = vmatpush1.xpose.msra.mxu0 %v385
    %430 = vmatprep.subr.mxu0 0.0
    %431 = vmatpush1.xpose.msra.mxu0 %v388
    %432 = vmatprep.subr.mxu0 0.0
    %433 = vmatpush1.xpose.msra.mxu0 %v391
    %434 = vmatprep.subr.mxu0 0.0
    %435 = vmatpush1.xpose.msra.mxu0 %v394
    %436 = vmatprep.subr.mxu0 0.0
    %437 = vmatpush1.xpose.msra.mxu0 %v397
    %438 = vmatprep.subr.mxu0 0.0
    %439 = vmatpush1.xpose.msra.mxu0 %v400
    %440 = vmatprep.subr.mxu0 0.0
    %441 = vmatpush1.xpose.msra.mxu0 %v403
    %442 = vmatprep.subr.mxu0 0.0
    %443 = vmatpush1.xpose.msra.mxu0 %v406
    %444 = vmatprep.subr.mxu0 0.0
    %445 = vmatpush1.xpose.msra.mxu0 %v409
    %446 = vmatprep.subr.mxu0 0.0
    %447 = vmatpush1.xpose.msra.mxu0 %v412
    %448 = vmatprep.subr.mxu0 0.0
    %449 = vmatpush1.xpose.msra.mxu0 %v415
    %450 = vmatprep.subr.mxu0 0.0
    %451 = vmatpush1.xpose.msra.mxu0 %v418
    %452 = vmatprep.subr.mxu0 0.0
    %453 = vmatpush1.xpose.msra.mxu0 0.0
    %454 = vmatprep.subr.mxu0 0.0
    %455 = vmatpush1.xpose.msra.mxu0 0.0
    %456 = vmatprep.subr.mxu0 0.0
    %457 = vmatpush1.xpose.msra.mxu0 0.0
    %458 = vmatprep.subr.mxu0 0.0
    %459 = vmatpush1.xpose.msra.mxu0 0.0
    %460 = vmatprep.subr.mxu0 0.0
    %461 = vmatpush1.xpose.msra.mxu0 0.0
    %462 = vmatprep.subr.mxu0 0.0
    %463 = vmatpush1.xpose.msra.mxu0 0.0
    %464 = vmatprep.subr.mxu0 0.0
    %465 = vmatpush1.xpose.msra.mxu0 0.0
    %466 = vmatprep.subr.mxu0 0.0
    %467 = vmatpush1.xpose.msra.mxu0 0.0
    %468 = vmatprep.subr.mxu0 0.0
    %469 = vmatpush1.xpose.msra.mxu0 0.0
    %470 = vmatprep.subr.mxu0 0.0
    %471 = vmatpush1.xpose.msra.mxu0 0.0
    %472 = vmatprep.subr.mxu0 0.0
    %473 = vmatpush1.xpose.msra.mxu0 0.0
    %474 = vmatprep.subr.mxu0 0.0
    %475 = vmatpush1.xpose.msra.mxu0 0.0
    %476 = vmatprep.subr.mxu0 0.0
    %477 = vmatpush1.xpose.msra.mxu0 0.0
    %478 = vmatprep.subr.mxu0 0.0
    %479 = vmatpush1.xpose.msra.mxu0 0.0
    %480 = vmatprep.subr.mxu0 0.0
    %481 = vmatpush1.xpose.msra.mxu0 0.0
    %482 = vmatprep.subr.mxu0 0.0
    %483 = vmatpush1.xpose.msra.mxu0 0.0
    %484 = vmatprep.mubr.f32.mxu0 0.0
    %485 = vmatmul.mubr.f32.gmra.mrb[0].mxu0 %v277
    %v486 = vpop.f32.mrb[0].mxu0
    %v487 = vadd.f32 %v118, %v486
    %v488 = vpop.f32.mrb[0].mxu0
    %489 = vmatprep.mubr.f32.mxu0 0.0
    %490 = vmatmul.mubr.f32.gmra.mrb[0].mxu0 %v280
    %v491 = vpop.f32.mrb[0].mxu0
    %v492 = vadd.f32 %v123, %v491
    %v493 = vpop.f32.mrb[0].mxu0
    %494 = vmatprep.mubr.f32.mxu0 0.0
    %495 = vmatmul.mubr.f32.gmra.mrb[0].mxu0 %v283
    %v496 = vpop.f32.mrb[0].mxu0
    %v497 = vadd.f32 %v128, %v496
    %v498 = vpop.f32.mrb[0].mxu0
    %499 = vmatprep.mubr.f32.mxu0 0.0
    %500 = vmatmul.mubr.f32.gmra.mrb[0].mxu0 %v286
    %v501 = vpop.f32.mrb[0].mxu0
    %v502 = vadd.f32 %v133, %v501
    %v503 = vpop.f32.mrb[0].mxu0
    %504 = vmatprep.mubr.f32.mxu0 0.0
    %505 = vmatmul.mubr.f32.gmra.mrb[0].mxu0 %v289
    %v506 = vpop.f32.mrb[0].mxu0
    %v507 = vadd.f32 %v138, %v506
    %v508 = vpop.f32.mrb[0].mxu0
    %509 = vmatprep.mubr.f32.mxu0 0.0
    %510 = vmatmul.mubr.f32.gmra.mrb[0].mxu0 %v292
    %v511 = vpop.f32.mrb[0].mxu0
    %v512 = vadd.f32 %v143, %v511
    %v513 = vpop.f32.mrb[0].mxu0
    %514 = vmatprep.mubr.f32.mxu0 0.0
    %515 = vmatmul.mubr.f32.gmra.mrb[0].mxu0 %v295
    %v516 = vpop.f32.mrb[0].mxu0
    %v517 = vadd.f32 %v148, %v516
    %v518 = vpop.f32.mrb[0].mxu0
    %519 = vmatprep.mubr.f32.mxu0 0.0
    %520 = vmatmul.mubr.f32.gmra.mrb[0].mxu0 %v298
    %v521 = vpop.f32.mrb[0].mxu0
    %v522 = vadd.f32 %v153, %v521
    %v523 = vpop.f32.mrb[0].mxu0
    %524 = vmatprep.mubr.f32.mxu0 0.0
    %525 = vmatmul.mubr.f32.gmra.mrb[0].mxu0 %v301
    %v526 = vpop.f32.mrb[0].mxu0
    %v527 = vadd.f32 %v158, %v526
    %v528 = vpop.f32.mrb[0].mxu0
    %529 = vmatprep.mubr.f32.mxu0 0.0
    %530 = vmatmul.mubr.f32.gmra.mrb[0].mxu0 %v304
    %v531 = vpop.f32.mrb[0].mxu0
    %v532 = vadd.f32 %v163, %v531
    %v533 = vpop.f32.mrb[0].mxu0
    %534 = vmatprep.mubr.f32.mxu0 0.0
    %535 = vmatmul.mubr.f32.gmra.mrb[0].mxu0 %v307
    %v536 = vpop.f32.mrb[0].mxu0
    %v537 = vadd.f32 %v168, %v536
    %v538 = vpop.f32.mrb[0].mxu0
    %539 = vmatprep.mubr.f32.mxu0 0.0
    %540 = vmatmul.mubr.f32.gmra.mrb[0].mxu0 %v310
    %v541 = vpop.f32.mrb[0].mxu0
    %v542 = vadd.f32 %v173, %v541
    %v543 = vpop.f32.mrb[0].mxu0
    %544 = vmatprep.mubr.f32.mxu0 0.0
    %545 = vmatmul.mubr.f32.gmra.mrb[0].mxu0 %v313
    %v546 = vpop.f32.mrb[0].mxu0
    %v547 = vadd.f32 %v178, %v546
    %v548 = vpop.f32.mrb[0].mxu0
    %549 = vmatprep.mubr.f32.mxu0 0.0
    %550 = vmatmul.mubr.f32.gmra.mrb[0].mxu0 %v316
    %v551 = vpop.f32.mrb[0].mxu0
    %v552 = vadd.f32 %v183, %v551
    %v553 = vpop.f32.mrb[0].mxu0
    %554 = vmatprep.mubr.f32.mxu0 0.0
    %555 = vmatmul.mubr.f32.gmra.mrb[0].mxu0 %v319
    %v556 = vpop.f32.mrb[0].mxu0
    %v557 = vadd.f32 %v188, %v556
    %v558 = vpop.f32.mrb[0].mxu0
    %559 = vmatprep.mubr.f32.mxu0 0.0
    %560 = vmatmul.mubr.f32.gmra.mrb[0].mxu0 %v322
    %v561 = vpop.f32.mrb[0].mxu0
    %v562 = vadd.f32 %v193, %v561
    %v563 = vpop.f32.mrb[0].mxu0
    %564 = vmatprep.mubr.f32.mxu0 0.0
    %565 = vmatmul.mubr.f32.gmra.mrb[0].mxu0 %v325
    %v566 = vpop.f32.mrb[0].mxu0
    %v567 = vadd.f32 %v198, %v566
    %v568 = vpop.f32.mrb[0].mxu0
    %569 = vmatprep.mubr.f32.mxu0 0.0
    %570 = vmatmul.mubr.f32.gmra.mrb[0].mxu0 %v328
    %v571 = vpop.f32.mrb[0].mxu0
    %v572 = vadd.f32 %v203, %v571
    %v573 = vpop.f32.mrb[0].mxu0
    %574 = vmatprep.mubr.f32.mxu0 0.0
    %575 = vmatmul.mubr.f32.gmra.mrb[0].mxu0 %v331
    %v576 = vpop.f32.mrb[0].mxu0
    %v577 = vadd.f32 %v208, %v576
    %v578 = vpop.f32.mrb[0].mxu0
    %579 = vmatprep.mubr.f32.mxu0 0.0
    %580 = vmatmul.mubr.f32.gmra.mrb[0].mxu0 %v334
    %v581 = vpop.f32.mrb[0].mxu0
    %v582 = vadd.f32 %v213, %v581
    %v583 = vpop.f32.mrb[0].mxu0
    %584 = vmatprep.mubr.f32.mxu0 0.0
    %585 = vmatmul.mubr.f32.gmra.mrb[0].mxu0 %v337
    %v586 = vpop.f32.mrb[0].mxu0
    %v587 = vadd.f32 %v218, %v586
    %v588 = vpop.f32.mrb[0].mxu0
    %589 = vmatprep.mubr.f32.mxu0 0.0
    %590 = vmatmul.mubr.f32.gmra.mrb[0].mxu0 %v340
    %v591 = vpop.f32.mrb[0].mxu0
    %v592 = vadd.f32 %v223, %v591
    %v593 = vpop.f32.mrb[0].mxu0
    %594 = vmatprep.mubr.f32.mxu0 0.0
    %595 = vmatmul.mubr.f32.gmra.mrb[0].mxu0 %v343
    %v596 = vpop.f32.mrb[0].mxu0
    %v597 = vadd.f32 %v228, %v596
    %v598 = vpop.f32.mrb[0].mxu0
    %599 = vmatprep.mubr.f32.mxu0 0.0
    %600 = vmatmul.mubr.f32.gmra.mrb[0].mxu0 %v346
    %v601 = vpop.f32.mrb[0].mxu0
    %v602 = vadd.f32 %v233, %v601
    %v603 = vpop.f32.mrb[0].mxu0
    %604 = vmatprep.mubr.f32.mxu0 0.0
    %605 = vmatmul.mubr.f32.gmra.mrb[0].mxu0 %v349
    %v606 = vpop.f32.mrb[0].mxu0
    %v607 = vadd.f32 %v238, %v606
    %v608 = vpop.f32.mrb[0].mxu0
    %609 = vmatprep.mubr.f32.mxu0 0.0
    %610 = vmatmul.mubr.f32.gmra.mrb[0].mxu0 %v352
    %v611 = vpop.f32.mrb[0].mxu0
    %v612 = vadd.f32 %v243, %v611
    %v613 = vpop.f32.mrb[0].mxu0
    %614 = vmatprep.mubr.f32.mxu0 0.0
    %615 = vmatmul.mubr.f32.gmra.mrb[0].mxu0 %v355
    %v616 = vpop.f32.mrb[0].mxu0
    %v617 = vadd.f32 %v248, %v616
    %v618 = vpop.f32.mrb[0].mxu0
    %619 = vmatprep.mubr.f32.mxu0 0.0
    %620 = vmatmul.mubr.f32.gmra.mrb[0].mxu0 %v358
    %v621 = vpop.f32.mrb[0].mxu0
    %v622 = vadd.f32 %v253, %v621
    %v623 = vpop.f32.mrb[0].mxu0
    %624 = vmatprep.mubr.f32.mxu0 0.0
    %625 = vmatmul.mubr.f32.gmra.mrb[0].mxu0 %v361
    %v626 = vpop.f32.mrb[0].mxu0
    %v627 = vadd.f32 %v258, %v626
    %v628 = vpop.f32.mrb[0].mxu0
    %629 = vmatprep.mubr.f32.mxu0 0.0
    %630 = vmatmul.mubr.f32.gmra.mrb[0].mxu0 %v364
    %v631 = vpop.f32.mrb[0].mxu0
    %v632 = vadd.f32 %v263, %v631
    %v633 = vpop.f32.mrb[0].mxu0
    %634 = vmatprep.mubr.f32.mxu0 0.0
    %635 = vmatmul.mubr.f32.gmra.mrb[0].mxu0 %v367
    %v636 = vpop.f32.mrb[0].mxu0
    %v637 = vadd.f32 %v268, %v636
    %v638 = vpop.f32.mrb[0].mxu0
    %639 = vmatprep.mubr.f32.mxu0 0.0
    %640 = vmatmul.mubr.f32.gmra.mrb[0].mxu0 %v370
    %v641 = vpop.f32.mrb[0].mxu0
    %v642 = vadd.f32 %v273, %v641
    %v643 = vpop.f32.mrb[0].mxu0
    %644 = vdwg.mxu0
    %v645 = vmax.f32 %v487, 0.0
    %v646 = vmax.f32 %v492, 0.0
    %v647 = vmax.f32 %v497, 0.0
    %v648 = vmax.f32 %v502, 0.0
    %v649 = vmax.f32 %v507, 0.0
    %v650 = vmax.f32 %v512, 0.0
    %v651 = vmax.f32 %v517, 0.0
    %v652 = vmax.f32 %v522, 0.0
    %v653 = vmax.f32 %v527, 0.0
    %v654 = vmax.f32 %v532, 0.0
    %v655 = vmax.f32 %v537, 0.0
    %v656 = vmax.f32 %v542, 0.0
    %v657 = vmax.f32 %v547, 0.0
    %v658 = vmax.f32 %v552, 0.0
    %v659 = vmax.f32 %v557, 0.0
    %v660 = vmax.f32 %v562, 0.0
    %v661 = vmax.f32 %v567, 0.0
    %v662 = vmax.f32 %v572, 0.0
    %v663 = vmax.f32 %v577, 0.0
    %v664 = vmax.f32 %v582, 0.0
    %v665 = vmax.f32 %v587, 0.0
    %v666 = vmax.f32 %v592, 0.0
    %v667 = vmax.f32 %v597, 0.0
    %v668 = vmax.f32 %v602, 0.0
    %v669 = vmax.f32 %v607, 0.0
    %v670 = vmax.f32 %v612, 0.0
    %v671 = vmax.f32 %v617, 0.0
    %v672 = vmax.f32 %v622, 0.0
    %v673 = vmax.f32 %v627, 0.0
    %v674 = vmax.f32 %v632, 0.0
    %v675 = vmax.f32 %v637, 0.0
    %v676 = vmax.f32 %v642, 0.0
    %v677 = vld [vmem:[%s3] sm:$0xff]
    %v678 = vld [vmem:[%s3 + $0x8] sm:$0xff]
    %v679 = vld [vmem:[%s3 + $0x10] sm:$0xff]
    %v680 = vld [vmem:[%s3 + $0x18] sm:$0xff]
    %v681 = vld [vmem:[%s3 + $0x20] sm:$0xff]
    %v682 = vld [vmem:[%s3 + $0x28] sm:$0xff]
    %v683 = vld [vmem:[%s3 + $0x30] sm:$0xff]
    %v684 = vld [vmem:[%s3 + $0x38] sm:$0xff]
    %v685 = vld [vmem:[%s3 + $0x40] sm:$0xff]
    %v686 = vld [vmem:[%s3 + $0x48] sm:$0xff]
    %v687 = vld [vmem:[%s3 + $0x50] sm:$0xff]
    %v688 = vld [vmem:[%s3 + $0x58] sm:$0xff]
    %v689 = vld [vmem:[%s3 + $0x60] sm:$0xff]
    %v690 = vld [vmem:[%s3 + $0x68] sm:$0xff]
    %v691 = vld [vmem:[%s3 + $0x70] sm:$0xff]
    %v692 = vld [vmem:[%s3 + $0x78] sm:$0xff]
    %v693 = vld [vmem:[%s3 + $0x80] sm:$0xff]
    %v694 = vld [vmem:[%s3 + $0x88] sm:$0xff]
    %v695 = vld [vmem:[%s3 + $0x90] sm:$0xff]
    %v696 = vld [vmem:[%s3 + $0x98] sm:$0xff]
    %v697 = vld [vmem:[%s3 + $0xa0] sm:$0xff]
    %v698 = vld [vmem:[%s3 + $0xa8] sm:$0xff]
    %v699 = vld [vmem:[%s3 + $0xb0] sm:$0xff]
    %v700 = vld [vmem:[%s3 + $0xb8] sm:$0xff]
    %v701 = vld [vmem:[%s3 + $0xc0] sm:$0xff]
    %v702 = vld [vmem:[%s3 + $0xc8] sm:$0xff]
    %v703 = vld [vmem:[%s3 + $0xd0] sm:$0xff]
    %v704 = vld [vmem:[%s3 + $0xd8] sm:$0xff]
    %v705 = vld [vmem:[%s3 + $0xe0] sm:$0xff]
    %v706 = vld [vmem:[%s3 + $0xe8] sm:$0xff]
    %v707 = vld [vmem:[%s3 + $0xf0] sm:$0xff]
    %v708 = vld [vmem:[%s3 + $0xf8] sm:$0xff]
    %v709 = vld [vmem:[%s4] sm:$0xff]
    %v710 = vld [vmem:[%s4 + $0x8] sm:$0xff]
    %v711 = vld [vmem:[%s4 + $0x10] sm:$0xff]
    %v712 = vld [vmem:[%s4 + $0x18] sm:$0xff]
    %v713 = vld [vmem:[%s4 + $0x20] sm:$0xff]
    %v714 = vld [vmem:[%s4 + $0x28] sm:$0xff]
    %v715 = vld [vmem:[%s4 + $0x30] sm:$0xff]
    %v716 = vld [vmem:[%s4 + $0x38] sm:$0xff]
    %v717 = vld [vmem:[%s4 + $0x40] sm:$0xff]
    %v718 = vld [vmem:[%s4 + $0x48] sm:$0xff]
    %v719 = vld [vmem:[%s4 + $0x50] sm:$0xff]
    %v720 = vld [vmem:[%s4 + $0x58] sm:$0xff]
    %v721 = vld [vmem:[%s4 + $0x60] sm:$0xff]
    %v722 = vld [vmem:[%s4 + $0x68] sm:$0xff]
    %v723 = vld [vmem:[%s4 + $0x70] sm:$0xff]
    %v724 = vld [vmem:[%s4 + $0x78] sm:$0xff]
    %726 = vset.pattern.permute.xlu0 0
    %727 = vperm.xlu0 %726, %v709
    %v728 = vpop.permute.xlu0 %727
    %731 = vset.pattern.permute.xlu0 0
    %732 = vperm.xlu0 %731, %v710
    %v733 = vpop.permute.xlu0 %732
    %736 = vset.pattern.permute.xlu0 0
    %737 = vperm.xlu0 %736, %v711
    %v738 = vpop.permute.xlu0 %737
    %741 = vset.pattern.permute.xlu0 0
    %742 = vperm.xlu0 %741, %v712
    %v743 = vpop.permute.xlu0 %742
    %746 = vset.pattern.permute.xlu0 0
    %747 = vperm.xlu0 %746, %v713
    %v748 = vpop.permute.xlu0 %747
    %751 = vset.pattern.permute.xlu0 0
    %752 = vperm.xlu0 %751, %v714
    %v753 = vpop.permute.xlu0 %752
    %756 = vset.pattern.permute.xlu0 0
    %757 = vperm.xlu0 %756, %v715
    %v758 = vpop.permute.xlu0 %757
    %761 = vset.pattern.permute.xlu0 0
    %762 = vperm.xlu0 %761, %v716
    %v763 = vpop.permute.xlu0 %762
    %766 = vset.pattern.permute.xlu0 0
    %767 = vperm.xlu0 %766, %v717
    %v768 = vpop.permute.xlu0 %767
    %771 = vset.pattern.permute.xlu0 0
    %772 = vperm.xlu0 %771, %v718
    %v773 = vpop.permute.xlu0 %772
    %776 = vset.pattern.permute.xlu0 0
    %777 = vperm.xlu0 %776, %v719
    %v778 = vpop.permute.xlu0 %777
    %781 = vset.pattern.permute.xlu0 0
    %782 = vperm.xlu0 %781, %v720
    %v783 = vpop.permute.xlu0 %782
    %786 = vset.pattern.permute.xlu0 0
    %787 = vperm.xlu0 %786, %v721
    %v788 = vpop.permute.xlu0 %787
    %791 = vset.pattern.permute.xlu0 0
    %792 = vperm.xlu0 %791, %v722
    %v793 = vpop.permute.xlu0 %792
    %796 = vset.pattern.permute.xlu0 0
    %797 = vperm.xlu0 %796, %v723
    %v798 = vpop.permute.xlu0 %797
    %801 = vset.pattern.permute.xlu0 0
    %802 = vperm.xlu0 %801, %v724
    %v803 = vpop.permute.xlu0 %802
    %805 = vmatprep.subr.mxu0 0.0
    %806 = vmatpush1.msra.mxu0 %v645
    %807 = vmatprep.subr.mxu0 0.0
    %808 = vmatpush1.msra.mxu0 %v646
    %809 = vmatprep.subr.mxu0 0.0
    %810 = vmatpush1.msra.mxu0 %v647
    %811 = vmatprep.subr.mxu0 0.0
    %812 = vmatpush1.msra.mxu0 %v648
    %813 = vmatprep.subr.mxu0 0.0
    %814 = vmatpush1.msra.mxu0 %v649
    %815 = vmatprep.subr.mxu0 0.0
    %816 = vmatpush1.msra.mxu0 %v650
    %817 = vmatprep.subr.mxu0 0.0
    %818 = vmatpush1.msra.mxu0 %v651
    %819 = vmatprep.subr.mxu0 0.0
    %820 = vmatpush1.msra.mxu0 %v652
    %821 = vmatprep.subr.mxu0 0.0
    %822 = vmatpush1.msra.mxu0 %v653
    %823 = vmatprep.subr.mxu0 0.0
    %824 = vmatpush1.msra.mxu0 %v654
    %825 = vmatprep.subr.mxu0 0.0
    %826 = vmatpush1.msra.mxu0 %v655
    %827 = vmatprep.subr.mxu0 0.0
    %828 = vmatpush1.msra.mxu0 %v656
    %829 = vmatprep.subr.mxu0 0.0
    %830 = vmatpush1.msra.mxu0 %v657
    %831 = vmatprep.subr.mxu0 0.0
    %832 = vmatpush1.msra.mxu0 %v658
    %833 = vmatprep.subr.mxu0 0.0
    %834 = vmatpush1.msra.mxu0 %v659
    %835 = vmatprep.subr.mxu0 0.0
    %836 = vmatpush1.msra.mxu0 %v660
    %837 = vmatprep.subr.mxu0 0.0
    %838 = vmatpush1.msra.mxu0 %v661
    %839 = vmatprep.subr.mxu0 0.0
    %840 = vmatpush1.msra.mxu0 %v662
    %841 = vmatprep.subr.mxu0 0.0
    %842 = vmatpush1.msra.mxu0 %v663
    %843 = vmatprep.subr.mxu0 0.0
    %844 = vmatpush1.msra.mxu0 %v664
    %845 = vmatprep.subr.mxu0 0.0
    %846 = vmatpush1.msra.mxu0 %v665
    %847 = vmatprep.subr.mxu0 0.0
    %848 = vmatpush1.msra.mxu0 %v666
    %849 = vmatprep.subr.mxu0 0.0
    %850 = vmatpush1.msra.mxu0 %v667
    %851 = vmatprep.subr.mxu0 0.0
    %852 = vmatpush1.msra.mxu0 %v668
    %853 = vmatprep.subr.mxu0 0.0
    %854 = vmatpush1.msra.mxu0 %v669
    %855 = vmatprep.subr.mxu0 0.0
    %856 = vmatpush1.msra.mxu0 %v670
    %857 = vmatprep.subr.mxu0 0.0
    %858 = vmatpush1.msra.mxu0 %v671
    %859 = vmatprep.subr.mxu0 0.0
    %860 = vmatpush1.msra.mxu0 %v672
    %861 = vmatprep.subr.mxu0 0.0
    %862 = vmatpush1.msra.mxu0 %v673
    %863 = vmatprep.subr.mxu0 0.0
    %864 = vmatpush1.msra.mxu0 %v674
    %865 = vmatprep.subr.mxu0 0.0
    %866 = vmatpush1.msra.mxu0 %v675
    %867 = vmatprep.subr.mxu0 0.0
    %868 = vmatpush1.msra.mxu0 %v676
    %869 = vmatprep.mubr.f32.mxu0 %v678
    %870 = vmatmul.mubr.f32.gmra.mrb[0].mxu0 %v677
    %v871 = vpop.f32.mrb[0].mxu0
    %v872 = vadd.f32 %v728, %v871
    %v873 = vpop.f32.mrb[0].mxu0
    %874 = vmatprep.mubr.f32.mxu0 %v680
    %875 = vmatmul.mubr.f32.gmra.mrb[0].mxu0 %v679
    %v876 = vpop.f32.mrb[0].mxu0
    %v877 = vadd.f32 %v733, %v876
    %v878 = vpop.f32.mrb[0].mxu0
    %879 = vmatprep.mubr.f32.mxu0 %v682
    %880 = vmatmul.mubr.f32.gmra.mrb[0].mxu0 %v681
    %v881 = vpop.f32.mrb[0].mxu0
    %v882 = vadd.f32 %v738, %v881
    %v883 = vpop.f32.mrb[0].mxu0
    %884 = vmatprep.mubr.f32.mxu0 %v684
    %885 = vmatmul.mubr.f32.gmra.mrb[0].mxu0 %v683
    %v886 = vpop.f32.mrb[0].mxu0
    %v887 = vadd.f32 %v743, %v886
    %v888 = vpop.f32.mrb[0].mxu0
    %889 = vmatprep.mubr.f32.mxu0 %v686
    %890 = vmatmul.mubr.f32.gmra.mrb[0].mxu0 %v685
    %v891 = vpop.f32.mrb[0].mxu0
    %v892 = vadd.f32 %v748, %v891
    %v893 = vpop.f32.mrb[0].mxu0
    %894 = vmatprep.mubr.f32.mxu0 %v688
    %895 = vmatmul.mubr.f32.gmra.mrb[0].mxu0 %v687
    %v896 = vpop.f32.mrb[0].mxu0
    %v897 = vadd.f32 %v753, %v896
    %v898 = vpop.f32.mrb[0].mxu0
    %899 = vmatprep.mubr.f32.mxu0 %v690
    %900 = vmatmul.mubr.f32.gmra.mrb[0].mxu0 %v689
    %v901 = vpop.f32.mrb[0].mxu0
    %v902 = vadd.f32 %v758, %v901
    %v903 = vpop.f32.mrb[0].mxu0
    %904 = vmatprep.mubr.f32.mxu0 %v692
    %905 = vmatmul.mubr.f32.gmra.mrb[0].mxu0 %v691
    %v906 = vpop.f32.mrb[0].mxu0
    %v907 = vadd.f32 %v763, %v906
    %v908 = vpop.f32.mrb[0].mxu0
    %909 = vmatprep.mubr.f32.mxu0 %v694
    %910 = vmatmul.mubr.f32.gmra.mrb[0].mxu0 %v693
    %v911 = vpop.f32.mrb[0].mxu0
    %v912 = vadd.f32 %v768, %v911
    %v913 = vpop.f32.mrb[0].mxu0
    %914 = vmatprep.mubr.f32.mxu0 %v696
    %915 = vmatmul.mubr.f32.gmra.mrb[0].mxu0 %v695
    %v916 = vpop.f32.mrb[0].mxu0
    %v917 = vadd.f32 %v773, %v916
    %v918 = vpop.f32.mrb[0].mxu0
    %919 = vmatprep.mubr.f32.mxu0 %v698
    %920 = vmatmul.mubr.f32.gmra.mrb[0].mxu0 %v697
    %v921 = vpop.f32.mrb[0].mxu0
    %v922 = vadd.f32 %v778, %v921
    %v923 = vpop.f32.mrb[0].mxu0
    %924 = vmatprep.mubr.f32.mxu0 %v700
    %925 = vmatmul.mubr.f32.gmra.mrb[0].mxu0 %v699
    %v926 = vpop.f32.mrb[0].mxu0
    %v927 = vadd.f32 %v783, %v926
    %v928 = vpop.f32.mrb[0].mxu0
    %929 = vmatprep.mubr.f32.mxu0 %v702
    %930 = vmatmul.mubr.f32.gmra.mrb[0].mxu0 %v701
    %v931 = vpop.f32.mrb[0].mxu0
    %v932 = vadd.f32 %v788, %v931
    %v933 = vpop.f32.mrb[0].mxu0
    %934 = vmatprep.mubr.f32.mxu0 %v704
    %935 = vmatmul.mubr.f32.gmra.mrb[0].mxu0 %v703
    %v936 = vpop.f32.mrb[0].mxu0
    %v937 = vadd.f32 %v793, %v936
    %v938 = vpop.f32.mrb[0].mxu0
    %939 = vmatprep.mubr.f32.mxu0 %v706
    %940 = vmatmul.mubr.f32.gmra.mrb[0].mxu0 %v705
    %v941 = vpop.f32.mrb[0].mxu0
    %v942 = vadd.f32 %v798, %v941
    %v943 = vpop.f32.mrb[0].mxu0
    %944 = vmatprep.mubr.f32.mxu0 %v708
    %945 = vmatmul.mubr.f32.gmra.mrb[0].mxu0 %v707
    %v946 = vpop.f32.mrb[0].mxu0
    %v947 = vadd.f32 %v803, %v946
    %v948 = vpop.f32.mrb[0].mxu0
    %949 = vdwg.mxu0
    %v950 = vmax.f32 %v872, 0.0
    %v951 = vmax.f32 %v877, 0.0
    %v952 = vmax.f32 %v882, 0.0
    %v953 = vmax.f32 %v887, 0.0
    %v954 = vmax.f32 %v892, 0.0
    %v955 = vmax.f32 %v897, 0.0
    %v956 = vmax.f32 %v902, 0.0
    %v957 = vmax.f32 %v907, 0.0
    %v958 = vmax.f32 %v912, 0.0
    %v959 = vmax.f32 %v917, 0.0
    %v960 = vmax.f32 %v922, 0.0
    %v961 = vmax.f32 %v927, 0.0
    %v962 = vmax.f32 %v932, 0.0
    %v963 = vmax.f32 %v937, 0.0
    %v964 = vmax.f32 %v942, 0.0
    %v965 = vmax.f32 %v947, 0.0
    %v966 = vld [vmem:[%s5] sm:$0xff]
    %v967 = vld [vmem:[%s5 + $0x8] sm:$0xff]
    %v968 = vld [vmem:[%s5 + $0x10] sm:$0xff]
    %v969 = vld [vmem:[%s5 + $0x18] sm:$0xff]
    %v970 = vld [vmem:[%s5 + $0x20] sm:$0xff]
    %v971 = vld [vmem:[%s5 + $0x28] sm:$0xff]
    %v972 = vld [vmem:[%s5 + $0x30] sm:$0xff]
    %v973 = vld [vmem:[%s5 + $0x38] sm:$0xff]
    %v974 = vld [vmem:[%s6] sm:$0xff]
    %v975 = vld [vmem:[%s6 + $0x8] sm:$0xff]
    %v976 = vld [vmem:[%s6 + $0x10] sm:$0xff]
    %v977 = vld [vmem:[%s6 + $0x18] sm:$0xff]
    %v978 = vld [vmem:[%s6 + $0x20] sm:$0xff]
    %v979 = vld [vmem:[%s6 + $0x28] sm:$0xff]
    %v980 = vld [vmem:[%s6 + $0x30] sm:$0xff]
    %v981 = vld [vmem:[%s6 + $0x38] sm:$0xff]
    %983 = vset.pattern.permute.xlu0 0
    %984 = vperm.xlu0 %983, %v974
    %v985 = vpop.permute.xlu0 %984
    %988 = vset.pattern.permute.xlu0 0
    %989 = vperm.xlu0 %988, %v975
    %v990 = vpop.permute.xlu0 %989
    %993 = vset.pattern.permute.xlu0 0
    %994 = vperm.xlu0 %993, %v976
    %v995 = vpop.permute.xlu0 %994
    %998 = vset.pattern.permute.xlu0 0
    %999 = vperm.xlu0 %998, %v977
    %v1000 = vpop.permute.xlu0 %999
    %1003 = vset.pattern.permute.xlu0 0
    %1004 = vperm.xlu0 %1003, %v978
    %v1005 = vpop.permute.xlu0 %1004
    %1008 = vset.pattern.permute.xlu0 0
    %1009 = vperm.xlu0 %1008, %v979
    %v1010 = vpop.permute.xlu0 %1009
    %1013 = vset.pattern.permute.xlu0 0
    %1014 = vperm.xlu0 %1013, %v980
    %v1015 = vpop.permute.xlu0 %1014
    %1018 = vset.pattern.permute.xlu0 0
    %1019 = vperm.xlu0 %1018, %v981
    %v1020 = vpop.permute.xlu0 %1019
    %1022 = vmatprep.subr.mxu0 0.0
    %1023 = vmatpush1.msra.mxu0 %v950
    %1024 = vmatprep.subr.mxu0 0.0
    %1025 = vmatpush1.msra.mxu0 %v951
    %1026 = vmatprep.subr.mxu0 0.0
    %1027 = vmatpush1.msra.mxu0 %v952
    %1028 = vmatprep.subr.mxu0 0.0
    %1029 = vmatpush1.msra.mxu0 %v953
    %1030 = vmatprep.subr.mxu0 0.0
    %1031 = vmatpush1.msra.mxu0 %v954
    %1032 = vmatprep.subr.mxu0 0.0
    %1033 = vmatpush1.msra.mxu0 %v955
    %1034 = vmatprep.subr.mxu0 0.0
    %1035 = vmatpush1.msra.mxu0 %v956
    %1036 = vmatprep.subr.mxu0 0.0
    %1037 = vmatpush1.msra.mxu0 %v957
    %1038 = vmatprep.subr.mxu0 0.0
    %1039 = vmatpush1.msra.mxu0 %v958
    %1040 = vmatprep.subr.mxu0 0.0
    %1041 = vmatpush1.msra.mxu0 %v959
    %1042 = vmatprep.subr.mxu0 0.0
    %1043 = vmatpush1.msra.mxu0 %v960
    %1044 = vmatprep.subr.mxu0 0.0
    %1045 = vmatpush1.msra.mxu0 %v961
    %1046 = vmatprep.subr.mxu0 0.0
    %1047 = vmatpush1.msra.mxu0 %v962
    %1048 = vmatprep.subr.mxu0 0.0
    %1049 = vmatpush1.msra.mxu0 %v963
    %1050 = vmatprep.subr.mxu0 0.0
    %1051 = vmatpush1.msra.mxu0 %v964
    %1052 = vmatprep.subr.mxu0 0.0
    %1053 = vmatpush1.msra.mxu0 %v965
    %1054 = vmatprep.subr.mxu0 0.0
    %1055 = vmatpush1.msra.mxu0 0.0
    %1056 = vmatprep.subr.mxu0 0.0
    %1057 = vmatpush1.msra.mxu0 0.0
    %1058 = vmatprep.subr.mxu0 0.0
    %1059 = vmatpush1.msra.mxu0 0.0
    %1060 = vmatprep.subr.mxu0 0.0
    %1061 = vmatpush1.msra.mxu0 0.0
    %1062 = vmatprep.subr.mxu0 0.0
    %1063 = vmatpush1.msra.mxu0 0.0
    %1064 = vmatprep.subr.mxu0 0.0
    %1065 = vmatpush1.msra.mxu0 0.0
    %1066 = vmatprep.subr.mxu0 0.0
    %1067 = vmatpush1.msra.mxu0 0.0
    %1068 = vmatprep.subr.mxu0 0.0
    %1069 = vmatpush1.msra.mxu0 0.0
    %1070 = vmatprep.subr.mxu0 0.0
    %1071 = vmatpush1.msra.mxu0 0.0
    %1072 = vmatprep.subr.mxu0 0.0
    %1073 = vmatpush1.msra.mxu0 0.0
    %1074 = vmatprep.subr.mxu0 0.0
    %1075 = vmatpush1.msra.mxu0 0.0
    %1076 = vmatprep.subr.mxu0 0.0
    %1077 = vmatpush1.msra.mxu0 0.0
    %1078 = vmatprep.subr.mxu0 0.0
    %1079 = vmatpush1.msra.mxu0 0.0
    %1080 = vmatprep.subr.mxu0 0.0
    %1081 = vmatpush1.msra.mxu0 0.0
    %1082 = vmatprep.subr.mxu0 0.0
    %1083 = vmatpush1.msra.mxu0 0.0
    %1084 = vmatprep.subr.mxu0 0.0
    %1085 = vmatpush1.msra.mxu0 0.0
    %1086 = vmatprep.mubr.f32.mxu0 0.0
    %1087 = vmatmul.mubr.f32.gmra.mrb[0].mxu0 %v966
    %v1088 = vpop.f32.mrb[0].mxu0
    %v1089 = vadd.f32 %v985, %v1088
    %v1090 = vpop.f32.mrb[0].mxu0
    %1091 = vmatprep.mubr.f32.mxu0 0.0
    %1092 = vmatmul.mubr.f32.gmra.mrb[0].mxu0 %v967
    %v1093 = vpop.f32.mrb[0].mxu0
    %v1094 = vadd.f32 %v990, %v1093
    %v1095 = vpop.f32.mrb[0].mxu0
    %1096 = vmatprep.mubr.f32.mxu0 0.0
    %1097 = vmatmul.mubr.f32.gmra.mrb[0].mxu0 %v968
    %v1098 = vpop.f32.mrb[0].mxu0
    %v1099 = vadd.f32 %v995, %v1098
    %v1100 = vpop.f32.mrb[0].mxu0
    %1101 = vmatprep.mubr.f32.mxu0 0.0
    %1102 = vmatmul.mubr.f32.gmra.mrb[0].mxu0 %v969
    %v1103 = vpop.f32.mrb[0].mxu0
    %v1104 = vadd.f32 %v1000, %v1103
    %v1105 = vpop.f32.mrb[0].mxu0
    %1106 = vmatprep.mubr.f32.mxu0 0.0
    %1107 = vmatmul.mubr.f32.gmra.mrb[0].mxu0 %v970
    %v1108 = vpop.f32.mrb[0].mxu0
    %v1109 = vadd.f32 %v1005, %v1108
    %v1110 = vpop.f32.mrb[0].mxu0
    %1111 = vmatprep.mubr.f32.mxu0 0.0
    %1112 = vmatmul.mubr.f32.gmra.mrb[0].mxu0 %v971
    %v1113 = vpop.f32.mrb[0].mxu0
    %v1114 = vadd.f32 %v1010, %v1113
    %v1115 = vpop.f32.mrb[0].mxu0
    %1116 = vmatprep.mubr.f32.mxu0 0.0
    %1117 = vmatmul.mubr.f32.gmra.mrb[0].mxu0 %v972
    %v1118 = vpop.f32.mrb[0].mxu0
    %v1119 = vadd.f32 %v1015, %v1118
    %v1120 = vpop.f32.mrb[0].mxu0
    %1121 = vmatprep.mubr.f32.mxu0 0.0
    %1122 = vmatmul.mubr.f32.gmra.mrb[0].mxu0 %v973
    %v1123 = vpop.f32.mrb[0].mxu0
    %v1124 = vadd.f32 %v1020, %v1123
    %v1125 = vpop.f32.mrb[0].mxu0
    %1126 = vdwg.mxu0
    %v1127 = vmax.f32 %v1089, 0.0
    %v1128 = vmax.f32 %v1094, 0.0
    %v1129 = vmax.f32 %v1099, 0.0
    %v1130 = vmax.f32 %v1104, 0.0
    %v1131 = vmax.f32 %v1109, 0.0
    %v1132 = vmax.f32 %v1114, 0.0
    %v1133 = vmax.f32 %v1119, 0.0
    %v1134 = vmax.f32 %v1124, 0.0
    %v1135 = vld [vmem:[%s7] sm:$0xff]
    %v1136 = vld [vmem:[%s7 + $0x8] sm:$0xff]
    %v1137 = vld [vmem:[%s7 + $0x10] sm:$0xff]
    %v1138 = vld [vmem:[%s7 + $0x18] sm:$0xff]
    %v1139 = vld [vmem:[%s7 + $0x20] sm:$0xff]
    %v1140 = vld [vmem:[%s7 + $0x28] sm:$0xff]
    %v1141 = vld [vmem:[%s7 + $0x30] sm:$0xff]
    %v1142 = vld [vmem:[%s7 + $0x38] sm:$0xff]
    %1144 = vset.pattern.permute.xlu0 0
    %1145 = vperm.xlu0 %1144, %v1135
    %v1146 = vpop.permute.xlu0 %1145
    %1149 = vset.pattern.permute.xlu0 0
    %1150 = vperm.xlu0 %1149, %v1136
    %v1151 = vpop.permute.xlu0 %1150
    %1154 = vset.pattern.permute.xlu0 0
    %1155 = vperm.xlu0 %1154, %v1137
    %v1156 = vpop.permute.xlu0 %1155
    %1159 = vset.pattern.permute.xlu0 0
    %1160 = vperm.xlu0 %1159, %v1138
    %v1161 = vpop.permute.xlu0 %1160
    %1164 = vset.pattern.permute.xlu0 0
    %1165 = vperm.xlu0 %1164, %v1139
    %v1166 = vpop.permute.xlu0 %1165
    %1169 = vset.pattern.permute.xlu0 0
    %1170 = vperm.xlu0 %1169, %v1140
    %v1171 = vpop.permute.xlu0 %1170
    %1174 = vset.pattern.permute.xlu0 0
    %1175 = vperm.xlu0 %1174, %v1141
    %v1176 = vpop.permute.xlu0 %1175
    %1179 = vset.pattern.permute.xlu0 0
    %1180 = vperm.xlu0 %1179, %v1142
    %v1181 = vpop.permute.xlu0 %1180
    %v1183 = vmul.f32 %v1127, %v1146
    %v1184 = vmul.f32 %v1128, %v1151
    %v1185 = vmul.f32 %v1129, %v1156
    %v1186 = vmul.f32 %v1130, %v1161
    %v1187 = vmul.f32 %v1131, %v1166
    %v1188 = vmul.f32 %v1132, %v1171
    %v1189 = vmul.f32 %v1133, %v1176
    %v1190 = vmul.f32 %v1134, %v1181
    %v1191 = vadd.f32 %v1183, %v1184
    %v1192 = vadd.f32 %v1191, %v1185
    %v1193 = vadd.f32 %v1192, %v1186
    %v1194 = vadd.f32 %v1193, %v1187
    %v1195 = vadd.f32 %v1194, %v1188
    %v1196 = vadd.f32 %v1195, %v1189
    %v1197 = vadd.f32 %v1196, %v1190
    %v1198 = vrot.slane %v1197, 4
    %v1199 = vadd.f32 %v1197, %v1198
    %v1200 = vrot.slane %v1199, 2
    %v1201 = vadd.f32 %v1199, %v1200
    %v1202 = vrot.slane %v1201, 1
    %v1203 = vadd.f32 %v1201, %v1202
    %v1204 = vld [vmem:[#allocation2] sm:$0x1]
    %1206 = vset.pattern.permute.xlu0 0
    %1207 = vperm.xlu0 %1206, %v1204
    %v1208 = vpop.permute.xlu0 %1207
    %v1210 = vlaneseq
    %v1211 = vshrl.u32 %v1210, 7
    %v1212 = vsub.s32 0, %v1211
    %v1213 = vrot.slane %v1208, %v1212
    %v1214 = vadd.f32 %v1203, %v1213
    %v1215 = vxor.u32 %v1214, 2147483648
    %v1216 = vmul.f32 %v1215, 1.442695
    %v1217 = vpow.pop %v1216
    %v1218 = vadd.f32 %v1217, 1.0
    %v1219 = vrcp.pop %v1218
    %v1220 = vmul.f32 1.0, %v1219
    %1221 = vst [vmem:[#allocation3] sm:$0x1] %v1220
    // Predicated region
    $region38: #{tpu_custom_call.1} parent=1 // pred_check
      _
    $region39: #{tpu_custom_call.1} parent=1 // pred_check_branch
      %1223 = sbr.rel (0) target = $region41
    $region40: #{tpu_custom_call.1} parent=1 // pred_region
      %s1225 = ssub.s32 16, 16
      %1226 = vsyncadd [#allocation4], %s1225
      %s1228 = sshll.u32 [#allocation3], 4
      %s1229 = int_to_ptr.vmem [resolvable:$true] %s1228
      %1231 = dma.vmem_to_hbm [thread:$0]  %s1229, 16, %s9, [#allocation4]
    $region41: #{tpu_custom_call.1} parent=1 // pred_fallthru
      _
    // Predicated region
    $region42: #{tpu_custom_call.1} parent=1 // pred_check
      _
    $region43: #{tpu_custom_call.1} parent=1 // pred_check_branch
      %1233 = sbr.rel (0) target = $region45
    $region44: #{tpu_custom_call.1} parent=1 // pred_region
      %1234 = dma.done [#allocation4], 16
    $region45: #{tpu_custom_call.1} parent=1 // pred_fallthru
      _
    %1235 = vsyncpa [#allocation4], 1

</llo_original>
